<compile_context>
chip_gen: v7x
topology: tpu7x:2x2x1
jax: 0.10.0
libtpu: 0.0.40
codegen_flags: <defaults>
</compile_context>

<pallas_src>
import jax
import jax.numpy as jnp
from jax import lax
from jax.experimental import pallas as pl
from jax.experimental.pallas import tpu as pltpu


def _make_kernel(block_b, n_true, n_pad):
    needs_mask = n_pad != n_true

    def kernel(x_ref, mT_ref, wv_ref, wkb_ref, bv_ref, o_ref):
        mT = mT_ref[...]      # (C, C) bf16  = (Wq^T Wk)^T = Wk^T Wq
        wv = wv_ref[...]      # (C, C) bf16  = gamma * Wv
        wkb = wkb_ref[...]    # (C, 1) f32   = (bq^T Wk)^T
        bv = bv_ref[...]      # (C, 1) f32   = gamma * bv

        for b in range(block_b):          # static, tiny (1 or B/2)
            x_f32 = x_ref[b]                                        # (C, N) f32
            x = x_f32.astype(jnp.bfloat16)                          # MXU operand

            # Folded Q/K projection, lane-dense canonical matmul:
            #   uT[c', i] = sum_c (Wk^T Wq)[c', c] x[c, i] + (bq^T Wk)[c']
            uT = jnp.dot(mT, x, preferred_element_type=jnp.float32) + wkb   # (C, N)

            # energy[i, j] = sum_c uT[c, i] x[c, j]  (bf16 transpose of uT)
            u = uT.astype(jnp.bfloat16).T                                    # (N, C)
            energy = jnp.dot(u, x, preferred_element_type=jnp.float32)       # (N, N)

            if needs_mask:
                key_idx = lax.broadcasted_iota(jnp.int32, energy.shape, 1)
                energy = jnp.where(key_idx < n_true, energy, -jnp.inf)

            # Max-stabilized softmax over keys, f32; divide on the EUP.
            m_row = jnp.max(energy, axis=-1, keepdims=True)
            p = jnp.exp(energy - m_row)
            inv_l = pl.reciprocal(jnp.sum(p, axis=-1, keepdims=True),
                                  approx=True)
            attn = (p * inv_l).astype(jnp.bfloat16)                          # (N, N)

            # Value projection (gamma pre-folded): v = gamma * (Wv x + bv)
            v = jnp.dot(wv, x, preferred_element_type=jnp.float32) + bv      # (C, N)

            # out[c, i] = sum_j v[c, j] attn[i, j]   (trans-B dot_general)
            out = lax.dot_general(
                v.astype(jnp.bfloat16), attn,
                dimension_numbers=(((1,), (1,)), ((), ())),
                preferred_element_type=jnp.float32)                          # (C, N)

            # Residual (gamma already folded into v).
            o_ref[b] = out + x_f32

    return kernel


def self_attention_pallas(x_nchw, wq, bq, wk, bk, wv, bv, gamma):
    """x_nchw: (B, C, W, H) f32; wq/wk: (C//8, C); wv: (C, C); 1-D biases."""
    B, C, W, H = x_nchw.shape
    N = W * H
    N_pad = ((N + 127) // 128) * 128

    # NCHW -> (B, C, N): pure reshape (no HBM transpose); pad N to lane width.
    x = x_nchw.reshape(B, C, N).astype(jnp.float32)
    if N_pad != N:
        x = jnp.pad(x, ((0, 0), (0, 0), (0, N_pad - N)))

    g = gamma.reshape(()).astype(jnp.float32)

    # Wrapper-side (one-time) weight folding:
    #   M^T  = Wk^T Wq        (C, C)  -> lane-dense uT = M^T x projection
    #   wkb  = (bq^T Wk)^T    (C, 1)  -> per-key bias folded into uT
    #   Wv,bv scaled by gamma          -> residual is plain `out + x`
    # (bk only adds per-query constants that cancel in the key-softmax.)
    mT_fold = (wk.T @ wq).astype(jnp.bfloat16)                 # (C, C)
    wkb_col = (bq @ wk).reshape(C, 1).astype(jnp.float32)      # (C, 1)
    wv_b = (g * wv).astype(jnp.bfloat16)                       # (C, C)
    bv_col = (g * bv).reshape(C, 1).astype(jnp.float32)        # (C, 1)

    # Grid: min(B, 2) steps — 2 'parallel' steps feed both v7x TensorCores;
    # on single-TC chips (v5e/v6e) this costs at most one extra ~0.35us step
    # vs. a fully collapsed grid while avoiding a per-batch serial loop.
    if B >= 2 and B % 2 == 0:
        num_steps, block_b = 2, B // 2
    else:
        num_steps, block_b = 1, B

    # Explicit VMEM budget: (N,N) energy/p f32 + attn bf16 dominate, plus
    # 2-deep pipelined x/out blocks and the (C,N) working set. Clamp to
    # [32 MiB, 56 MiB] so v7x (64 MiB physical) keeps headroom and v5e's
    # 16 MiB scoped default is raised.
    nn_bytes = block_b * (2 * N_pad * N_pad * 4 + N_pad * N_pad * 2)
    cn_bytes = block_b * 6 * C * N_pad * 4
    io_bytes = 4 * block_b * C * N_pad * 4
    weight_bytes = 2 * C * C * 2 + 2 * C * 4
    est = int(1.5 * (nn_bytes + cn_bytes + io_bytes + weight_bytes))
    vmem_limit_bytes = int(min(max(est, 32 * 1024 * 1024), 56 * 1024 * 1024))

    kernel = _make_kernel(block_b, N, N_pad)

    out = pl.pallas_call(
        kernel,
        out_shape=jax.ShapeDtypeStruct((B, C, N_pad), jnp.float32),
        grid_spec=pltpu.PrefetchScalarGridSpec(
            num_scalar_prefetch=0,
            grid=(num_steps,),
            in_specs=[
                pl.BlockSpec((block_b, C, N_pad), lambda s: (s, 0, 0)),  # x
                pl.BlockSpec((C, C), lambda s: (0, 0)),                  # Wk^T Wq
                pl.BlockSpec((C, C), lambda s: (0, 0)),                  # gamma*Wv
                pl.BlockSpec((C, 1), lambda s: (0, 0)),                  # (bq^T Wk)^T
                pl.BlockSpec((C, 1), lambda s: (0, 0)),                  # gamma*bv
            ],
            out_specs=pl.BlockSpec((block_b, C, N_pad), lambda s: (s, 0, 0)),
        ),
        compiler_params=pltpu.CompilerParams(
            dimension_semantics=("parallel",),
            vmem_limit_bytes=vmem_limit_bytes),
    )(x, mT_fold, wv_b, wkb_col, bv_col)

    if N_pad != N:
        out = out[:, :, :N]
    # (B, C, N) -> NCHW: pure reshape.
    return out.reshape(B, C, W, H)


def self_attention_reference(x_nchw, wq, bq, wk, bk, wv, bv, gamma):
    """Pure-JAX port of the PyTorch forward (NCHW, full f32), for validation."""
    B, C, W, H = x_nchw.shape
    N = W * H
    xf = x_nchw.reshape(B, C, N)
    q = jnp.einsum('oc,bcn->bon', wq, xf) + bq[None, :, None]   # (B, C8, N)
    k = jnp.einsum('oc,bcn->bon', wk, xf) + bk[None, :, None]   # (B, C8, N)
    v = jnp.einsum('oc,bcn->bon', wv, xf) + bv[None, :, None]   # (B, C,  N)
    energy = jnp.einsum('bcn,bcm->bnm', q, k)                   # (B, N, N)
    attn = jax.nn.softmax(energy, axis=-1)
    out = jnp.einsum('bcm,bnm->bcn', v, attn).reshape(B, C, W, H)
    return gamma[0] * out + x_nchw


if __name__ == "__main__":
    # in_dim = 32 -> C // 8 = 4;  N = 16*16 = 256 (lane-dense multiple of 128)
    B, C, W, H = 2, 32, 16, 16
    C8 = C // 8

    key = jax.random.PRNGKey(0)
    kx, kq, kk, kv, kbq, kbk, kbv = jax.random.split(key, 7)

    x = jax.random.normal(kx, (B, C, W, H), dtype=jnp.float32)

    # nn.Conv2d(in, out, kernel_size=1) with kernel dims squeezed:
    # weight (out, in), bias (out,).
    wq = 0.1 * jax.random.normal(kq, (C8, C), dtype=jnp.float32)
    wk = 0.1 * jax.random.normal(kk, (C8, C), dtype=jnp.float32)
    wv = 0.1 * jax.random.normal(kv, (C, C), dtype=jnp.float32)
    bq = 0.1 * jax.random.normal(kbq, (C8,), dtype=jnp.float32)
    bk = 0.1 * jax.random.normal(kbk, (C8,), dtype=jnp.float32)
    bv = 0.1 * jax.random.normal(kbv, (C,), dtype=jnp.float32)
    # Module __init__ sets gamma = 0; use a nonzero value so the attention
    # path actually contributes to the checked output.
    gamma = jnp.array([0.5], dtype=jnp.float32)

    out = self_attention_pallas(x, wq, bq, wk, bk, wv, bv, gamma)
    out = jax.block_until_ready(out)

    ref = self_attention_reference(x, wq, bq, wk, bk, wv, bv, gamma)
    ref = jax.block_until_ready(ref)

    assert out.shape == (B, C, W, H)
    # bf16 MXU operands + approx reciprocal vs. an f32 reference -> use a
    # bf16-appropriate tolerance.
    max_err = float(jnp.max(jnp.abs(out - ref)))
    assert jnp.allclose(out, ref, rtol=2e-2, atol=2e-2), (
        f"max abs err = {max_err}")

    print("KERNEL_OK")
</pallas_src>

<mosaic_0001>
module attributes {stable_mosaic.version = 11 : i64} {
  func.func @kernel(%arg0: i32, %arg1: memref<1x32x256xf32, #tpu.memory_space<vmem>>, %arg2: memref<32x32xbf16, #tpu.memory_space<vmem>>, %arg3: memref<32x32xbf16, #tpu.memory_space<vmem>>, %arg4: memref<32x1xf32, #tpu.memory_space<vmem>>, %arg5: memref<32x1xf32, #tpu.memory_space<vmem>>, %arg6: memref<1x32x256xf32, #tpu.memory_space<vmem>>) attributes {dimension_semantics = [#tpu.dimension_semantics<parallel>], iteration_bounds = array<i64: 2>, scalar_prefetch = 0 : i64, scratch_operands = 0 : i64, tpu.core_type = #tpu.core_type<tc>, window_params = [{transform_indices = @transform_0, window_bounds = array<i64: 1, 32, 256>}, {pipeline_mode = #tpu.pipeline_mode<synchronous>, transform_indices = @transform_1, window_bounds = array<i64: 32, 32>}, {pipeline_mode = #tpu.pipeline_mode<synchronous>, transform_indices = @transform_2, window_bounds = array<i64: 32, 32>}, {pipeline_mode = #tpu.pipeline_mode<synchronous>, transform_indices = @transform_3, window_bounds = array<i64: 32, 1>}, {pipeline_mode = #tpu.pipeline_mode<synchronous>, transform_indices = @transform_4, window_bounds = array<i64: 32, 1>}, {transform_indices = @transform_5, window_bounds = array<i64: 1, 32, 256>}]} {
    %c0 = arith.constant 0 : index
    %c0_0 = arith.constant 0 : index
    %0 = vector.load %arg2[%c0, %c0_0] : memref<32x32xbf16, #tpu.memory_space<vmem>>, vector<32x32xbf16>
    %c0_1 = arith.constant 0 : index
    %c0_2 = arith.constant 0 : index
    %1 = vector.load %arg3[%c0_1, %c0_2] : memref<32x32xbf16, #tpu.memory_space<vmem>>, vector<32x32xbf16>
    %c0_3 = arith.constant 0 : index
    %c0_4 = arith.constant 0 : index
    %2 = vector.load %arg4[%c0_3, %c0_4] : memref<32x1xf32, #tpu.memory_space<vmem>>, vector<32x1xf32>
    %c0_5 = arith.constant 0 : index
    %c0_6 = arith.constant 0 : index
    %3 = vector.load %arg5[%c0_5, %c0_6] : memref<32x1xf32, #tpu.memory_space<vmem>>, vector<32x1xf32>
    %c0_7 = arith.constant 0 : index
    %c0_8 = arith.constant 0 : index
    %c0_9 = arith.constant 0 : index
    %4 = vector.load %arg1[%c0_7, %c0_8, %c0_9] : memref<1x32x256xf32, #tpu.memory_space<vmem>>, vector<1x32x256xf32>
    %5 = vector.shape_cast %4 : vector<1x32x256xf32> to vector<32x256xf32>
    %6 = arith.truncf %5 : vector<32x256xf32> to vector<32x256xbf16>
    %cst = arith.constant dense<0.000000e+00> : vector<32x256xf32>
    %7 = tpu.matmul %0, %6, %cst {dimension_numbers = #tpu.dot_dimension_numbers<[1], [0], [0], [1], [0, 0, 1, 1], [], []>} : vector<32x32xbf16>, vector<32x256xbf16>, vector<32x256xf32> -> vector<32x256xf32>
    %8 = vector.broadcast %2 : vector<32x1xf32> to vector<32x256xf32>
    %9 = arith.addf %7, %8 : vector<32x256xf32>
    %10 = arith.truncf %9 : vector<32x256xf32> to vector<32x256xbf16>
    %11 = tpu.transpose %10, [1, 0] : vector<32x256xbf16> -> vector<256x32xbf16>
    %cst_10 = arith.constant dense<0.000000e+00> : vector<256x256xf32>
    %12 = tpu.matmul %11, %6, %cst_10 {dimension_numbers = #tpu.dot_dimension_numbers<[1], [0], [0], [1], [0, 0, 1, 1], [], []>} : vector<256x32xbf16>, vector<32x256xbf16>, vector<256x256xf32> -> vector<256x256xf32>
    %cst_11 = arith.constant dense<0xFF800000> : vector<256xf32>
    %13 = vector.multi_reduction <maximumf>, %12, %cst_11 [1] : vector<256x256xf32> to vector<256xf32>
    %14 = vector.shape_cast %13 : vector<256xf32> to vector<256x1xf32>
    %15 = vector.broadcast %14 : vector<256x1xf32> to vector<256x256xf32>
    %16 = arith.subf %12, %15 : vector<256x256xf32>
    %17 = math.exp %16 : vector<256x256xf32>
    %cst_12 = arith.constant dense<0.000000e+00> : vector<256xf32>
    %18 = vector.multi_reduction <add>, %17, %cst_12 [1] : vector<256x256xf32> to vector<256xf32>
    %19 = vector.shape_cast %18 : vector<256xf32> to vector<256x1xf32>
    %20 = tpu.reciprocal %19 {approx = true} : vector<256x1xf32> -> vector<256x1xf32>
    %21 = vector.broadcast %20 : vector<256x1xf32> to vector<256x256xf32>
    %22 = arith.mulf %17, %21 : vector<256x256xf32>
    %23 = arith.truncf %22 : vector<256x256xf32> to vector<256x256xbf16>
    %cst_13 = arith.constant dense<0.000000e+00> : vector<32x256xf32>
    %24 = tpu.matmul %1, %6, %cst_13 {dimension_numbers = #tpu.dot_dimension_numbers<[1], [0], [0], [1], [0, 0, 1, 1], [], []>} : vector<32x32xbf16>, vector<32x256xbf16>, vector<32x256xf32> -> vector<32x256xf32>
    %25 = vector.broadcast %3 : vector<32x1xf32> to vector<32x256xf32>
    %26 = arith.addf %24, %25 : vector<32x256xf32>
    %27 = arith.truncf %26 : vector<32x256xf32> to vector<32x256xbf16>
    %cst_14 = arith.constant dense<0.000000e+00> : vector<32x256xf32>
    %28 = tpu.matmul %27, %23, %cst_14 {dimension_numbers = #tpu.dot_dimension_numbers<[1], [1], [0], [0], [0, 0, 1, 0], [], []>} : vector<32x256xbf16>, vector<256x256xbf16>, vector<32x256xf32> -> vector<32x256xf32>
    %29 = arith.addf %28, %5 : vector<32x256xf32>
    %c0_15 = arith.constant 0 : index
    %c0_16 = arith.constant 0 : index
    %c0_17 = arith.constant 0 : index
    %30 = vector.load %arg6[%c0_15, %c0_16, %c0_17] : memref<1x32x256xf32, #tpu.memory_space<vmem>>, vector<1x32x256xf32>
    %31 = vector.shape_cast %30 : vector<1x32x256xf32> to vector<32x256xf32>
    %32 = vector.shape_cast %29 : vector<32x256xf32> to vector<1x32x256xf32>
    tpu.vector_store %arg6[%c0_15, %c0_16, %c0_17], %32 {strides = array<i32>} : memref<1x32x256xf32, #tpu.memory_space<vmem>>, vector<1x32x256xf32>,
    return
  }
  func.func @transform_0(%arg0: i32) -> (i32, i32, i32) {
    %c0_i32 = arith.constant 0 : i32
    %c0_i32_0 = arith.constant 0 : i32
    %c0_i32_1 = arith.constant 0 : i32
    return %arg0, %c0_i32, %c0_i32_0 : i32, i32, i32
  }
  func.func @transform_1(%arg0: i32) -> (i32, i32) {
    %c0_i32 = arith.constant 0 : i32
    %c0_i32_0 = arith.constant 0 : i32
    %c0_i32_1 = arith.constant 0 : i32
    return %c0_i32, %c0_i32_0 : i32, i32
  }
  func.func @transform_2(%arg0: i32) -> (i32, i32) {
    %c0_i32 = arith.constant 0 : i32
    %c0_i32_0 = arith.constant 0 : i32
    %c0_i32_1 = arith.constant 0 : i32
    return %c0_i32, %c0_i32_0 : i32, i32
  }
  func.func @transform_3(%arg0: i32) -> (i32, i32) {
    %c0_i32 = arith.constant 0 : i32
    %c0_i32_0 = arith.constant 0 : i32
    %c0_i32_1 = arith.constant 0 : i32
    return %c0_i32, %c0_i32_0 : i32, i32
  }
  func.func @transform_4(%arg0: i32) -> (i32, i32) {
    %c0_i32 = arith.constant 0 : i32
    %c0_i32_0 = arith.constant 0 : i32
    %c0_i32_1 = arith.constant 0 : i32
    return %c0_i32, %c0_i32_0 : i32, i32
  }
  func.func @transform_5(%arg0: i32) -> (i32, i32, i32) {
    %c0_i32 = arith.constant 0 : i32
    %c0_i32_0 = arith.constant 0 : i32
    %c0_i32_1 = arith.constant 0 : i32
    return %arg0, %c0_i32, %c0_i32_0 : i32, i32, i32
  }
}

</mosaic_0001>

<llo_original>
// kernel: tpu_custom_call.1
$region0: #{tpu_custom_call.1}
  #allocation0 [shape = 'u32[]', space=smem, size = 0x4, offset = 0x4, fixed_abs, tag = 'smem constant byte address 0x4 - core index']
  #allocation1 [shape = 'u32[144,128]{1,0:T(1,128)}', space=vmem, size = 0x12000, scoped, tag = 'internal scratch']
  %s0 = inlined_call_operand.hbm [shape: f32[2,32,256], index: 0, kind: input, shape index: {}]
  %s1 = inlined_call_operand.vmem [shape: bf16[32,32], index: 1, kind: input, shape index: {}]
  %s2 = inlined_call_operand.vmem [shape: bf16[32,32], index: 2, kind: input, shape index: {}]
  %s3 = inlined_call_operand.vmem [shape: f32[32,1], index: 3, kind: input, shape index: {}]
  %s4 = inlined_call_operand.vmem [shape: f32[32,1], index: 4, kind: input, shape index: {}]
  %s5 = inlined_call_operand.hbm [shape: f32[2,32,256], index: 5, kind: output, shape index: {}]
  %s6 = sld [smem:[#allocation0]]
  $region57: #{tpu_custom_call.1} parent=0
    _
  %s8 = ssub.s32 1, %s6
  %s9 = scalar_select 0, %s8, %s6
  $region1: #{tpu_custom_call.1} parent=0
    #allocation2 [shape = 'u8[65536]{0}', space=vmem, size = 0x10000, scoped, tag = 'input window, operand 0']
    #allocation3 [shape = 's32[2]{0}', space=sflag, size = 0x8, scoped, tag = 'scoped memory for tpu_custom_call.1']
    #allocation4 [shape = 's32[2]{0}', space=sflag, size = 0x8, scoped, tag = 'scoped memory for tpu_custom_call.1']
    #allocation5 [shape = 'u8[65536]{0}', space=vmem, size = 0x10000, scoped, tag = 'output window, operand 0']
    %10 = vsyncpa [#allocation3], 0
    %s11 = scalar_lea.sflag [#allocation3], 1
    %12 = vsyncpa %s11, 0
    %13 = vsyncpa [#allocation4], 0
    %s14 = scalar_lea.sflag [#allocation4], 1
    %15 = vsyncpa %s14, 0
    loop: start=0, step=1, limit=4
    $region2: #{tpu_custom_call.1} parent=1 // loop_pre_header
      _
    $region3: #{tpu_custom_call.1} parent=1 // loop_header
      %s17 = sphi 0, %s21
      %p18 = scmp.ge.s32.totalorder %s17, 4
      %s27 = sphi 0, %s29
      %s30 = sphi 0, %s27
      %s31 = sphi 0, %s30
      %s47 = sphi 0, %s31
      %s51 = sphi 0, %s51
      %s53 = sphi 0, %s51
      %s54 = sphi 0, %s53
      %s68 = sphi 0, %s54
      %s72 = sphi 0, %s72
      %s74 = sphi 0, %s72
      %s75 = sphi 0, %s74
      %s89 = sphi 0, %s75
      %s93 = sphi 0, %s93
      %s95 = sphi 0, %s93
      %s96 = sphi 0, %s95
      %s110 = sphi 0, %s96
      %s114 = sphi 0, %s114
      %s116 = sphi 0, %s114
      %s117 = sphi 0, %s116
      %s131 = sphi 0, %s117
      %s137 = sphi 0, %s139
      %s140 = sphi 0, %s137
      %s141 = sphi 0, %s140
      %s157 = sphi 0, %s141
    $region4: #{tpu_custom_call.1} parent=1 // loop_header_branch
      %20 = sbr.rel (%p18) target = $region8
    $region5: #{tpu_custom_call.1} parent=1 // loop_body
      %s22 = ssub.s32 %s17, 1
      %s23 = ssub.s32 %s17, 2
      %s24 = sadd.s32 %s17, 1
      %s25 = ssub.s32 %s17, %s24
      %p26 = scmp.eq.s32.totalorder %s25, 0
      %s28 = sadd.s32 %s27, 1
      %s29 = scalar_select %p26, %s27, %s28
      %p32 = pneg %p26
      %p33 = scmp.eq.s32.totalorder %s17, 1
      %p34 = por %p32, %p33
      %p35 = scmp.ne.s32.totalorder %s27, %s30
      %p36 = scmp.eq.s32.totalorder %s17, 0
      %p37 = por %p35, %p36
      %p38 = scmp.ne.s32.totalorder %s27, %s30
      %p39 = scmp.eq.s32.totalorder %s22, 1
      %p40 = por %p38, %p39
      %p41 = scmp.ne.s32.totalorder %s30, %s31
      %p42 = scmp.eq.s32.totalorder %s22, 0
      %p43 = por %p41, %p42
      %p44 = scmp.ne.s32.totalorder %s30, %s31
      %p45 = scmp.eq.s32.totalorder %s23, 1
      %p46 = por %p44, %p45
      %p48 = scmp.ne.s32.totalorder %s31, %s47
      %p49 = scmp.eq.s32.totalorder %s23, 0
      %p50 = por %p48, %p49
      %s52 = sadd.s32 %s51, 1
      %p55 = scmp.eq.s32.totalorder %s17, 1
      %p56 = scmp.ne.s32.totalorder %s51, %s53
      %p57 = scmp.eq.s32.totalorder %s17, 0
      %p58 = por %p56, %p57
      %p59 = scmp.ne.s32.totalorder %s51, %s53
      %p60 = scmp.eq.s32.totalorder %s22, 1
      %p61 = por %p59, %p60
      %p62 = scmp.ne.s32.totalorder %s53, %s54
      %p63 = scmp.eq.s32.totalorder %s22, 0
      %p64 = por %p62, %p63
      %p65 = scmp.ne.s32.totalorder %s53, %s54
      %p66 = scmp.eq.s32.totalorder %s23, 1
      %p67 = por %p65, %p66
      %p69 = scmp.ne.s32.totalorder %s54, %s68
      %p70 = scmp.eq.s32.totalorder %s23, 0
      %p71 = por %p69, %p70
      %s73 = sadd.s32 %s72, 1
      %p76 = scmp.eq.s32.totalorder %s17, 1
      %p77 = scmp.ne.s32.totalorder %s72, %s74
      %p78 = scmp.eq.s32.totalorder %s17, 0
      %p79 = por %p77, %p78
      %p80 = scmp.ne.s32.totalorder %s72, %s74
      %p81 = scmp.eq.s32.totalorder %s22, 1
      %p82 = por %p80, %p81
      %p83 = scmp.ne.s32.totalorder %s74, %s75
      %p84 = scmp.eq.s32.totalorder %s22, 0
      %p85 = por %p83, %p84
      %p86 = scmp.ne.s32.totalorder %s74, %s75
      %p87 = scmp.eq.s32.totalorder %s23, 1
      %p88 = por %p86, %p87
      %p90 = scmp.ne.s32.totalorder %s75, %s89
      %p91 = scmp.eq.s32.totalorder %s23, 0
      %p92 = por %p90, %p91
      %s94 = sadd.s32 %s93, 1
      %p97 = scmp.eq.s32.totalorder %s17, 1
      %p98 = scmp.ne.s32.totalorder %s93, %s95
      %p99 = scmp.eq.s32.totalorder %s17, 0
      %p100 = por %p98, %p99
      %p101 = scmp.ne.s32.totalorder %s93, %s95
      %p102 = scmp.eq.s32.totalorder %s22, 1
      %p103 = por %p101, %p102
      %p104 = scmp.ne.s32.totalorder %s95, %s96
      %p105 = scmp.eq.s32.totalorder %s22, 0
      %p106 = por %p104, %p105
      %p107 = scmp.ne.s32.totalorder %s95, %s96
      %p108 = scmp.eq.s32.totalorder %s23, 1
      %p109 = por %p107, %p108
      %p111 = scmp.ne.s32.totalorder %s96, %s110
      %p112 = scmp.eq.s32.totalorder %s23, 0
      %p113 = por %p111, %p112
      %s115 = sadd.s32 %s114, 1
      %p118 = scmp.eq.s32.totalorder %s17, 1
      %p119 = scmp.ne.s32.totalorder %s114, %s116
      %p120 = scmp.eq.s32.totalorder %s17, 0
      %p121 = por %p119, %p120
      %p122 = scmp.ne.s32.totalorder %s114, %s116
      %p123 = scmp.eq.s32.totalorder %s22, 1
      %p124 = por %p122, %p123
      %p125 = scmp.ne.s32.totalorder %s116, %s117
      %p126 = scmp.eq.s32.totalorder %s22, 0
      %p127 = por %p125, %p126
      %p128 = scmp.ne.s32.totalorder %s116, %s117
      %p129 = scmp.eq.s32.totalorder %s23, 1
      %p130 = por %p128, %p129
      %p132 = scmp.ne.s32.totalorder %s117, %s131
      %p133 = scmp.eq.s32.totalorder %s23, 0
      %p134 = por %p132, %p133
      %s135 = ssub.s32 %s17, %s24
      %p136 = scmp.eq.s32.totalorder %s135, 0
      %s138 = sadd.s32 %s137, 1
      %s139 = scalar_select %p136, %s137, %s138
      %p142 = pneg %p136
      %p143 = scmp.eq.s32.totalorder %s17, 1
      %p144 = por %p142, %p143
      %p145 = scmp.ne.s32.totalorder %s137, %s140
      %p146 = scmp.eq.s32.totalorder %s17, 0
      %p147 = por %p145, %p146
      %p148 = scmp.ne.s32.totalorder %s137, %s140
      %p149 = scmp.eq.s32.totalorder %s22, 1
      %p150 = por %p148, %p149
      %p151 = scmp.ne.s32.totalorder %s140, %s141
      %p152 = scmp.eq.s32.totalorder %s22, 0
      %p153 = por %p151, %p152
      %p154 = scmp.ne.s32.totalorder %s140, %s141
      %p155 = scmp.eq.s32.totalorder %s23, 1
      %p156 = por %p154, %p155
      %p158 = scmp.ne.s32.totalorder %s141, %s157
      %p159 = scmp.eq.s32.totalorder %s23, 0
      %p160 = por %p158, %p159
      %p161 = scmp.le.s32.totalorder 1, %s17
      %p162 = scmp.lt.s32.totalorder %s17, 3
      %p163 = pnand %p161, %p162
      %p164 = pneg %p163
      // Predicated region
      $region9: #{tpu_custom_call.1} parent=5 // pred_check
        _
      $region10: #{tpu_custom_call.1} parent=5 // pred_check_branch
        %166 = sbr.rel (%p163) target = $region12
      $region11: #{tpu_custom_call.1} parent=5 // pred_region
        %s167 = ssub.s32 %s17, 1
        // Predicated region
        $region13: #{tpu_custom_call.1} parent=11 // pred_check
          %p168 = pneg %p64
        $region14: #{tpu_custom_call.1} parent=11 // pred_check_branch
          %170 = sbr.rel (%p168) target = $region16
        $region15: #{tpu_custom_call.1} parent=11 // pred_region
          _
        $region16: #{tpu_custom_call.1} parent=11 // pred_fallthru
          _
        // Predicated region
        $region17: #{tpu_custom_call.1} parent=11 // pred_check
          %p171 = pneg %p85
        $region18: #{tpu_custom_call.1} parent=11 // pred_check_branch
          %173 = sbr.rel (%p171) target = $region20
        $region19: #{tpu_custom_call.1} parent=11 // pred_region
          _
        $region20: #{tpu_custom_call.1} parent=11 // pred_fallthru
          _
        // Predicated region
        $region21: #{tpu_custom_call.1} parent=11 // pred_check
          %p174 = pneg %p106
        $region22: #{tpu_custom_call.1} parent=11 // pred_check_branch
          %176 = sbr.rel (%p174) target = $region24
        $region23: #{tpu_custom_call.1} parent=11 // pred_region
          _
        $region24: #{tpu_custom_call.1} parent=11 // pred_fallthru
          _
        // Predicated region
        $region25: #{tpu_custom_call.1} parent=11 // pred_check
          %p177 = pneg %p127
        $region26: #{tpu_custom_call.1} parent=11 // pred_check_branch
          %179 = sbr.rel (%p177) target = $region28
        $region27: #{tpu_custom_call.1} parent=11 // pred_region
          _
        $region28: #{tpu_custom_call.1} parent=11 // pred_fallthru
          _
      $region12: #{tpu_custom_call.1} parent=5 // pred_fallthru
        _
      %p180 = scmp.lt.s32.totalorder %s17, 2
      // Predicated region
      $region29: #{tpu_custom_call.1} parent=5 // pred_check
        %p181 = pneg %p180
      $region30: #{tpu_custom_call.1} parent=5 // pred_check_branch
        %183 = sbr.rel (%p181) target = $region32
      $region31: #{tpu_custom_call.1} parent=5 // pred_region
        // Predicated region
        $region33: #{tpu_custom_call.1} parent=31 // pred_check
          %p184 = pneg %p37
        $region34: #{tpu_custom_call.1} parent=31 // pred_check_branch
          %186 = sbr.rel (%p184) target = $region36
        $region35: #{tpu_custom_call.1} parent=31 // pred_region
          %s187 = sand.u32 %s27, 1
          %s188 = scalar_lea.sflag [#allocation3], %s187
          %s189 = sand.u32 %s27, 1
          %s190 = smul.addr %s189, 64
          %s191 = scalar_lea.vmem [#allocation2], %s190
          %s193 = ssub.s32 1024, 1024
          %194 = vsyncadd %s188, %s193
          %s195 = smul.addr %s17, 8
          %s196 = smul.addr %s195, 128
          %s197 = scalar_lea.hbm %s0, %s196
          %s198 = sshll.u32 %s191, 4
          %s199 = int_to_ptr.vmem [resolvable:$true] %s198
          %204 = dma.hbm_to_vmem [thread:$0]  %s197, 1024, %s199, %s188, 256, 256, 16
        $region36: #{tpu_custom_call.1} parent=31 // pred_fallthru
          _
      $region32: #{tpu_custom_call.1} parent=5 // pred_fallthru
        _
      %p205 = scmp.le.s32.totalorder 1, %s17
      %p206 = scmp.lt.s32.totalorder %s17, 3
      %p207 = pnand %p205, %p206
      %p208 = pneg %p207
      // Predicated region
      $region37: #{tpu_custom_call.1} parent=5 // pred_check
        _
      $region38: #{tpu_custom_call.1} parent=5 // pred_check_branch
        %210 = sbr.rel (%p207) target = $region40
      $region39: #{tpu_custom_call.1} parent=5 // pred_region
        %s211 = ssub.s32 %s17, 1
        %s212 = sand.u32 %s30, 1
        %s213 = scalar_lea.sflag [#allocation3], %s212
        %s214 = sand.u32 %s30, 1
        %s215 = smul.addr %s214, 64
        %s216 = scalar_lea.vmem [#allocation2], %s215
        // Predicated region
        $region41: #{tpu_custom_call.1} parent=39 // pred_check
          %p217 = pneg %p43
        $region42: #{tpu_custom_call.1} parent=39 // pred_check_branch
          %219 = sbr.rel (%p217) target = $region44
        $region43: #{tpu_custom_call.1} parent=39 // pred_region
          %220 = dma.done %s213, 1024
        $region44: #{tpu_custom_call.1} parent=39 // pred_fallthru
          _
        %s221 = sand.u32 %s30, 1
        %s222 = scalar_lea.sflag [#allocation3], %s221
        %s223 = sand.u32 %s30, 1
        %s224 = smul.addr %s223, 64
        %s225 = scalar_lea.vmem [#allocation2], %s224
        %p226 = pneg %p43
        %p227 = pneg %p40
        %p228 = pneg %p64
        %p229 = pneg %p61
        %p230 = pneg %p85
        %p231 = pneg %p82
        %p232 = pneg %p106
        %p233 = pneg %p103
        %p234 = pneg %p127
        %p235 = pneg %p124
        %p236 = pneg %p153
        %p237 = pneg %p150
        %s238 = sand.u32 %s140, 1
        %s239 = scalar_lea.sflag [#allocation4], %s238
        %s240 = sand.u32 %s140, 1
        %s241 = smul.addr %s240, 64
        %s242 = scalar_lea.vmem [#allocation5], %s241
        %v244 = vld [vmem:[%s1] sm:$0xf]
        %v245 = vld [vmem:[%s1 + $0x4] sm:$0xf]
        %v246 = vld [vmem:[%s1 + $0x8] sm:$0xf]
        %v247 = vld [vmem:[%s1 + $0xc] sm:$0xf]
        %v248 = vld [vmem:[%s2] sm:$0xf]
        %v249 = vld [vmem:[%s2 + $0x4] sm:$0xf]
        %v250 = vld [vmem:[%s2 + $0x8] sm:$0xf]
        %v251 = vld [vmem:[%s2 + $0xc] sm:$0xf]
        %v252 = vld [vmem:[%s3] sm:$0xff]
        %v253 = vld [vmem:[%s3 + $0x8] sm:$0xff]
        %v254 = vld [vmem:[%s3 + $0x10] sm:$0xff]
        %v255 = vld [vmem:[%s3 + $0x18] sm:$0xff]
        %v256 = vld [vmem:[%s4] sm:$0xff]
        %v257 = vld [vmem:[%s4 + $0x8] sm:$0xff]
        %v258 = vld [vmem:[%s4 + $0x10] sm:$0xff]
        %v259 = vld [vmem:[%s4 + $0x18] sm:$0xff]
        %v260 = vld [vmem:[%s216] sm:$0xff]
        %v261 = vld [vmem:[%s216 + $0x8] sm:$0xff]
        %v262 = vld [vmem:[%s216 + $0x10] sm:$0xff]
        %v263 = vld [vmem:[%s216 + $0x18] sm:$0xff]
        %v264 = vld [vmem:[%s216 + $0x20] sm:$0xff]
        %v265 = vld [vmem:[%s216 + $0x28] sm:$0xff]
        %v266 = vld [vmem:[%s216 + $0x30] sm:$0xff]
        %v267 = vld [vmem:[%s216 + $0x38] sm:$0xff]
        %v268 = vpack.c.bf16 %v262, %v260
        %v269 = vpack.c.bf16 %v263, %v261
        %v270 = vpack.c.bf16 %v266, %v264
        %v271 = vpack.c.bf16 %v267, %v265
        %273 = vset.pattern.permute.xlu0 0
        %274 = vperm.xlu0 %273, %v252
        %v275 = vpop.permute.xlu0 %274
        %278 = vset.pattern.permute.xlu0 0
        %279 = vperm.xlu0 %278, %v253
        %v280 = vpop.permute.xlu0 %279
        %283 = vset.pattern.permute.xlu0 0
        %284 = vperm.xlu0 %283, %v254
        %v285 = vpop.permute.xlu0 %284
        %288 = vset.pattern.permute.xlu0 0
        %289 = vperm.xlu0 %288, %v255
        %v290 = vpop.permute.xlu0 %289
        %v296 = vunpack.c.l.b16 %v244
        %v297 = vunpack.c.l.b16 %v245
        %v298 = vunpack.c.l.b16 %v246
        %v299 = vunpack.c.l.b16 %v247
        %v300 = vpack.c.b16 %v297, %v296
        %v301 = vpack.c.b16 %v299, %v298
        %vm302 = vcmask 261120
        %v304 = vsel %vm302, %v300, 0
        %v307 = vsel %vm302, %v301, 0
        %309 = vmatprep.subr.bf16.mxu0 %v269
        %310 = vmatpush1.bf16.msra.mxu0 %v268
        %311 = vmatprep.subr.bf16.mxu0 %v271
        %312 = vmatpush1.bf16.msra.mxu0 %v270
        %313 = vmatprep.subr.bf16.mxu0 0
        %314 = vmatpush1.bf16.msra.mxu0 0
        %315 = vmatprep.subr.bf16.mxu0 0
        %316 = vmatpush1.bf16.msra.mxu0 0
        %317 = vmatprep.subr.bf16.mxu0 0
        %318 = vmatpush1.bf16.msra.mxu0 0
        %319 = vmatprep.subr.bf16.mxu0 0
        %320 = vmatpush1.bf16.msra.mxu0 0
        %321 = vmatprep.subr.bf16.mxu0 0
        %322 = vmatpush1.bf16.msra.mxu0 0
        %323 = vmatprep.subr.bf16.mxu0 0
        %324 = vmatpush1.bf16.msra.mxu0 0
        %325 = vmatprep.subr.bf16.mxu0 0
        %326 = vmatpush1.bf16.msra.mxu0 0
        %327 = vmatprep.subr.bf16.mxu0 0
        %328 = vmatpush1.bf16.msra.mxu0 0
        %329 = vmatprep.subr.bf16.mxu0 0
        %330 = vmatpush1.bf16.msra.mxu0 0
        %331 = vmatprep.subr.bf16.mxu0 0
        %332 = vmatpush1.bf16.msra.mxu0 0
        %333 = vmatprep.subr.bf16.mxu0 0
        %334 = vmatpush1.bf16.msra.mxu0 0
        %335 = vmatprep.subr.bf16.mxu0 0
        %336 = vmatpush1.bf16.msra.mxu0 0
        %337 = vmatprep.subr.bf16.mxu0 0
        %338 = vmatpush1.bf16.msra.mxu0 0
        %339 = vmatprep.subr.bf16.mxu0 0
        %340 = vmatpush1.bf16.msra.mxu0 0
        %341 = vmatprep.mubr.bf16.mxu0 0
        %342 = vmatmul.mubr.bf16.gmra.mrb[0].mxu0 %v304
        %v343 = vpop.f32.mrb[0].mxu0
        %v344 = vadd.f32 %v275, %v343
        %v345 = vpop.f32.mrb[0].mxu0
        %v346 = vadd.f32 %v275, %v345
        %v347 = vpop.f32.mrb[0].mxu0
        %v348 = vadd.f32 %v280, %v347
        %v349 = vpop.f32.mrb[0].mxu0
        %v350 = vadd.f32 %v280, %v349
        %351 = vmatprep.mubr.bf16.mxu0 0
        %352 = vmatmul.mubr.bf16.gmra.mrb[0].mxu0 %v307
        %v353 = vpop.f32.mrb[0].mxu0
        %v354 = vadd.f32 %v285, %v353
        %v355 = vpop.f32.mrb[0].mxu0
        %v356 = vadd.f32 %v285, %v355
        %v357 = vpop.f32.mrb[0].mxu0
        %v358 = vadd.f32 %v290, %v357
        %v359 = vpop.f32.mrb[0].mxu0
        %v360 = vadd.f32 %v290, %v359
        %361 = vdwg.mxu0
        %v362 = vpack.c.bf16 %v348, %v344
        %v363 = vpack.c.bf16 %v350, %v346
        %v364 = vpack.c.bf16 %v358, %v354
        %v365 = vpack.c.bf16 %v360, %v356
        %366 = vxpose.xlu0.c.b16.start [1/8] %v362, 128
        %367 = vxpose.xlu0.c.b16.cont [2/8] %v364, 128
        %368 = vxpose.xlu0.c.b16.cont [3/8] 0, 128
        %369 = vxpose.xlu0.c.b16.cont [4/8] 0, 128
        %370 = vxpose.xlu0.c.b16.cont [5/8] 0, 128
        %371 = vxpose.xlu0.c.b16.cont [6/8] 0, 128
        %372 = vxpose.xlu0.c.b16.cont [7/8] 0, 128
        %373 = vxpose.xlu0.c.b16.end [8/8] 0, 128
        %v374 = vpop.trf.xlu0
        %v375 = vpop.trf.xlu0
        %v376 = vpop.trf.xlu0
        %v377 = vpop.trf.xlu0
        %v378 = vpop.trf.xlu0
        %v379 = vpop.trf.xlu0
        %v380 = vpop.trf.xlu0
        %v381 = vpop.trf.xlu0
        %382 = vxpose.xlu0.c.b16.start [1/8] %v363, 128
        %383 = vxpose.xlu0.c.b16.cont [2/8] %v365, 128
        %384 = vxpose.xlu0.c.b16.cont [3/8] 0, 128
        %385 = vxpose.xlu0.c.b16.cont [4/8] 0, 128
        %386 = vxpose.xlu0.c.b16.cont [5/8] 0, 128
        %387 = vxpose.xlu0.c.b16.cont [6/8] 0, 128
        %388 = vxpose.xlu0.c.b16.cont [7/8] 0, 128
        %389 = vxpose.xlu0.c.b16.end [8/8] 0, 128
        %v390 = vpop.trf.xlu0
        %v391 = vpop.trf.xlu0
        %v392 = vpop.trf.xlu0
        %v393 = vpop.trf.xlu0
        %v394 = vpop.trf.xlu0
        %v395 = vpop.trf.xlu0
        %v396 = vpop.trf.xlu0
        %v397 = vpop.trf.xlu0
        %v399 = vsel %vm302, %v374, 0
        %v402 = vsel %vm302, %v375, 0
        %v405 = vsel %vm302, %v376, 0
        %v408 = vsel %vm302, %v377, 0
        %v411 = vsel %vm302, %v378, 0
        %v414 = vsel %vm302, %v379, 0
        %v417 = vsel %vm302, %v380, 0
        %v420 = vsel %vm302, %v381, 0
        %v423 = vsel %vm302, %v390, 0
        %v426 = vsel %vm302, %v391, 0
        %v429 = vsel %vm302, %v392, 0
        %v432 = vsel %vm302, %v393, 0
        %v435 = vsel %vm302, %v394, 0
        %v438 = vsel %vm302, %v395, 0
        %v441 = vsel %vm302, %v396, 0
        %v444 = vsel %vm302, %v397, 0
        %446 = vmatprep.subr.bf16.mxu0 %v269
        %447 = vmatpush1.bf16.msra.mxu0 %v268
        %448 = vmatprep.subr.bf16.mxu0 %v271
        %449 = vmatpush1.bf16.msra.mxu0 %v270
        %450 = vmatprep.subr.bf16.mxu0 0
        %451 = vmatpush1.bf16.msra.mxu0 0
        %452 = vmatprep.subr.bf16.mxu0 0
        %453 = vmatpush1.bf16.msra.mxu0 0
        %454 = vmatprep.subr.bf16.mxu0 0
        %455 = vmatpush1.bf16.msra.mxu0 0
        %456 = vmatprep.subr.bf16.mxu0 0
        %457 = vmatpush1.bf16.msra.mxu0 0
        %458 = vmatprep.subr.bf16.mxu0 0
        %459 = vmatpush1.bf16.msra.mxu0 0
        %460 = vmatprep.subr.bf16.mxu0 0
        %461 = vmatpush1.bf16.msra.mxu0 0
        %462 = vmatprep.subr.bf16.mxu0 0
        %463 = vmatpush1.bf16.msra.mxu0 0
        %464 = vmatprep.subr.bf16.mxu0 0
        %465 = vmatpush1.bf16.msra.mxu0 0
        %466 = vmatprep.subr.bf16.mxu0 0
        %467 = vmatpush1.bf16.msra.mxu0 0
        %468 = vmatprep.subr.bf16.mxu0 0
        %469 = vmatpush1.bf16.msra.mxu0 0
        %470 = vmatprep.subr.bf16.mxu0 0
        %471 = vmatpush1.bf16.msra.mxu0 0
        %472 = vmatprep.subr.bf16.mxu0 0
        %473 = vmatpush1.bf16.msra.mxu0 0
        %474 = vmatprep.subr.bf16.mxu0 0
        %475 = vmatpush1.bf16.msra.mxu0 0
        %476 = vmatprep.subr.bf16.mxu0 0
        %477 = vmatpush1.bf16.msra.mxu0 0
        %478 = vmatprep.mubr.bf16.mxu0 0
        %479 = vmatmul.mubr.bf16.gmra.mrb[0].mxu0 %v399
        %v480 = vpop.f32.mrb[0].mxu0
        %v481 = vadd.f32 0.0, %v480
        %v482 = vpop.f32.mrb[0].mxu0
        %v483 = vadd.f32 0.0, %v482
        %v484 = vpop.f32.mrb[0].mxu0
        %v485 = vadd.f32 0.0, %v484
        %v486 = vpop.f32.mrb[0].mxu0
        %v487 = vadd.f32 0.0, %v486
        %488 = vmatprep.mubr.bf16.mxu0 0
        %489 = vmatmul.mubr.bf16.gmra.mrb[0].mxu0 %v402
        %v490 = vpop.f32.mrb[0].mxu0
        %v491 = vadd.f32 0.0, %v490
        %v492 = vpop.f32.mrb[0].mxu0
        %v493 = vadd.f32 0.0, %v492
        %v494 = vpop.f32.mrb[0].mxu0
        %v495 = vadd.f32 0.0, %v494
        %v496 = vpop.f32.mrb[0].mxu0
        %v497 = vadd.f32 0.0, %v496
        %498 = vmatprep.mubr.bf16.mxu0 0
        %499 = vmatmul.mubr.bf16.gmra.mrb[0].mxu0 %v405
        %v500 = vpop.f32.mrb[0].mxu0
        %v501 = vadd.f32 0.0, %v500
        %v502 = vpop.f32.mrb[0].mxu0
        %v503 = vadd.f32 0.0, %v502
        %v504 = vpop.f32.mrb[0].mxu0
        %v505 = vadd.f32 0.0, %v504
        %v506 = vpop.f32.mrb[0].mxu0
        %v507 = vadd.f32 0.0, %v506
        %508 = vmatprep.mubr.bf16.mxu0 0
        %509 = vmatmul.mubr.bf16.gmra.mrb[0].mxu0 %v408
        %v510 = vpop.f32.mrb[0].mxu0
        %v511 = vadd.f32 0.0, %v510
        %v512 = vpop.f32.mrb[0].mxu0
        %v513 = vadd.f32 0.0, %v512
        %v514 = vpop.f32.mrb[0].mxu0
        %v515 = vadd.f32 0.0, %v514
        %v516 = vpop.f32.mrb[0].mxu0
        %v517 = vadd.f32 0.0, %v516
        %518 = vmatprep.mubr.bf16.mxu0 0
        %519 = vmatmul.mubr.bf16.gmra.mrb[0].mxu0 %v411
        %v520 = vpop.f32.mrb[0].mxu0
        %v521 = vadd.f32 0.0, %v520
        %v522 = vpop.f32.mrb[0].mxu0
        %v523 = vadd.f32 0.0, %v522
        %v524 = vpop.f32.mrb[0].mxu0
        %v525 = vadd.f32 0.0, %v524
        %v526 = vpop.f32.mrb[0].mxu0
        %v527 = vadd.f32 0.0, %v526
        %528 = vmatprep.mubr.bf16.mxu0 0
        %529 = vmatmul.mubr.bf16.gmra.mrb[0].mxu0 %v414
        %v530 = vpop.f32.mrb[0].mxu0
        %v531 = vadd.f32 0.0, %v530
        %v532 = vpop.f32.mrb[0].mxu0
        %v533 = vadd.f32 0.0, %v532
        %v534 = vpop.f32.mrb[0].mxu0
        %v535 = vadd.f32 0.0, %v534
        %v536 = vpop.f32.mrb[0].mxu0
        %v537 = vadd.f32 0.0, %v536
        %538 = vmatprep.mubr.bf16.mxu0 0
        %539 = vmatmul.mubr.bf16.gmra.mrb[0].mxu0 %v417
        %v540 = vpop.f32.mrb[0].mxu0
        %v541 = vadd.f32 0.0, %v540
        %v542 = vpop.f32.mrb[0].mxu0
        %v543 = vadd.f32 0.0, %v542
        %v544 = vpop.f32.mrb[0].mxu0
        %v545 = vadd.f32 0.0, %v544
        %v546 = vpop.f32.mrb[0].mxu0
        %v547 = vadd.f32 0.0, %v546
        %548 = vmatprep.mubr.bf16.mxu0 0
        %549 = vmatmul.mubr.bf16.gmra.mrb[0].mxu0 %v420
        %v550 = vpop.f32.mrb[0].mxu0
        %v551 = vadd.f32 0.0, %v550
        %v552 = vpop.f32.mrb[0].mxu0
        %v553 = vadd.f32 0.0, %v552
        %v554 = vpop.f32.mrb[0].mxu0
        %v555 = vadd.f32 0.0, %v554
        %v556 = vpop.f32.mrb[0].mxu0
        %v557 = vadd.f32 0.0, %v556
        %558 = vmatprep.mubr.bf16.mxu0 0
        %559 = vmatmul.mubr.bf16.gmra.mrb[0].mxu0 %v423
        %v560 = vpop.f32.mrb[0].mxu0
        %v561 = vadd.f32 0.0, %v560
        %v562 = vpop.f32.mrb[0].mxu0
        %v563 = vadd.f32 0.0, %v562
        %v564 = vpop.f32.mrb[0].mxu0
        %v565 = vadd.f32 0.0, %v564
        %v566 = vpop.f32.mrb[0].mxu0
        %v567 = vadd.f32 0.0, %v566
        %568 = vmatprep.mubr.bf16.mxu0 0
        %569 = vmatmul.mubr.bf16.gmra.mrb[0].mxu0 %v426
        %v570 = vpop.f32.mrb[0].mxu0
        %v571 = vadd.f32 0.0, %v570
        %v572 = vpop.f32.mrb[0].mxu0
        %v573 = vadd.f32 0.0, %v572
        %v574 = vpop.f32.mrb[0].mxu0
        %v575 = vadd.f32 0.0, %v574
        %v576 = vpop.f32.mrb[0].mxu0
        %v577 = vadd.f32 0.0, %v576
        %578 = vmatprep.mubr.bf16.mxu0 0
        %579 = vmatmul.mubr.bf16.gmra.mrb[0].mxu0 %v429
        %v580 = vpop.f32.mrb[0].mxu0
        %v581 = vadd.f32 0.0, %v580
        %v582 = vpop.f32.mrb[0].mxu0
        %v583 = vadd.f32 0.0, %v582
        %v584 = vpop.f32.mrb[0].mxu0
        %v585 = vadd.f32 0.0, %v584
        %v586 = vpop.f32.mrb[0].mxu0
        %v587 = vadd.f32 0.0, %v586
        %588 = vmatprep.mubr.bf16.mxu0 0
        %589 = vmatmul.mubr.bf16.gmra.mrb[0].mxu0 %v432
        %v590 = vpop.f32.mrb[0].mxu0
        %v591 = vadd.f32 0.0, %v590
        %v592 = vpop.f32.mrb[0].mxu0
        %v593 = vadd.f32 0.0, %v592
        %v594 = vpop.f32.mrb[0].mxu0
        %v595 = vadd.f32 0.0, %v594
        %v596 = vpop.f32.mrb[0].mxu0
        %v597 = vadd.f32 0.0, %v596
        %598 = vmatprep.mubr.bf16.mxu0 0
        %599 = vmatmul.mubr.bf16.gmra.mrb[0].mxu0 %v435
        %v600 = vpop.f32.mrb[0].mxu0
        %v601 = vadd.f32 0.0, %v600
        %v602 = vpop.f32.mrb[0].mxu0
        %v603 = vadd.f32 0.0, %v602
        %v604 = vpop.f32.mrb[0].mxu0
        %v605 = vadd.f32 0.0, %v604
        %v606 = vpop.f32.mrb[0].mxu0
        %v607 = vadd.f32 0.0, %v606
        %608 = vmatprep.mubr.bf16.mxu0 0
        %609 = vmatmul.mubr.bf16.gmra.mrb[0].mxu0 %v438
        %v610 = vpop.f32.mrb[0].mxu0
        %v611 = vadd.f32 0.0, %v610
        %v612 = vpop.f32.mrb[0].mxu0
        %v613 = vadd.f32 0.0, %v612
        %v614 = vpop.f32.mrb[0].mxu0
        %v615 = vadd.f32 0.0, %v614
        %v616 = vpop.f32.mrb[0].mxu0
        %v617 = vadd.f32 0.0, %v616
        %618 = vmatprep.mubr.bf16.mxu0 0
        %619 = vmatmul.mubr.bf16.gmra.mrb[0].mxu0 %v441
        %v620 = vpop.f32.mrb[0].mxu0
        %v621 = vadd.f32 0.0, %v620
        %v622 = vpop.f32.mrb[0].mxu0
        %v623 = vadd.f32 0.0, %v622
        %v624 = vpop.f32.mrb[0].mxu0
        %v625 = vadd.f32 0.0, %v624
        %v626 = vpop.f32.mrb[0].mxu0
        %v627 = vadd.f32 0.0, %v626
        %628 = vmatprep.mubr.bf16.mxu0 0
        %629 = vmatmul.mubr.bf16.gmra.mrb[0].mxu0 %v444
        %v630 = vpop.f32.mrb[0].mxu0
        %v631 = vadd.f32 0.0, %v630
        %v632 = vpop.f32.mrb[0].mxu0
        %v633 = vadd.f32 0.0, %v632
        %v634 = vpop.f32.mrb[0].mxu0
        %v635 = vadd.f32 0.0, %v634
        %v636 = vpop.f32.mrb[0].mxu0
        %v637 = vadd.f32 0.0, %v636
        %638 = vdwg.mxu0
        %v639 = vmax.f32 %v481, %v483
        %640 = vmax.xlane.f32.xlu0 %v639
        %v641 = vpop.xlane.xlu0 %640
        %v642 = vmax.f32 %v485, %v487
        %643 = vmax.xlane.f32.xlu0 %v642
        %v644 = vpop.xlane.xlu0 %643
        %v645 = vmax.f32 %v491, %v493
        %646 = vmax.xlane.f32.xlu0 %v645
        %v647 = vpop.xlane.xlu0 %646
        %v648 = vmax.f32 %v495, %v497
        %649 = vmax.xlane.f32.xlu0 %v648
        %v650 = vpop.xlane.xlu0 %649
        %v651 = vmax.f32 %v501, %v503
        %652 = vmax.xlane.f32.xlu0 %v651
        %v653 = vpop.xlane.xlu0 %652
        %v654 = vmax.f32 %v505, %v507
        %655 = vmax.xlane.f32.xlu0 %v654
        %v656 = vpop.xlane.xlu0 %655
        %v657 = vmax.f32 %v511, %v513
        %658 = vmax.xlane.f32.xlu0 %v657
        %v659 = vpop.xlane.xlu0 %658
        %v660 = vmax.f32 %v515, %v517
        %661 = vmax.xlane.f32.xlu0 %v660
        %v662 = vpop.xlane.xlu0 %661
        %v663 = vmax.f32 %v521, %v523
        %664 = vmax.xlane.f32.xlu0 %v663
        %v665 = vpop.xlane.xlu0 %664
        %v666 = vmax.f32 %v525, %v527
        %667 = vmax.xlane.f32.xlu0 %v666
        %v668 = vpop.xlane.xlu0 %667
        %v669 = vmax.f32 %v531, %v533
        %670 = vmax.xlane.f32.xlu0 %v669
        %v671 = vpop.xlane.xlu0 %670
        %v672 = vmax.f32 %v535, %v537
        %673 = vmax.xlane.f32.xlu0 %v672
        %v674 = vpop.xlane.xlu0 %673
        %v675 = vmax.f32 %v541, %v543
        %676 = vmax.xlane.f32.xlu0 %v675
        %v677 = vpop.xlane.xlu0 %676
        %v678 = vmax.f32 %v545, %v547
        %679 = vmax.xlane.f32.xlu0 %v678
        %v680 = vpop.xlane.xlu0 %679
        %v681 = vmax.f32 %v551, %v553
        %682 = vmax.xlane.f32.xlu0 %v681
        %v683 = vpop.xlane.xlu0 %682
        %v684 = vmax.f32 %v555, %v557
        %685 = vmax.xlane.f32.xlu0 %v684
        %v686 = vpop.xlane.xlu0 %685
        %v687 = vmax.f32 %v561, %v563
        %688 = vmax.xlane.f32.xlu0 %v687
        %v689 = vpop.xlane.xlu0 %688
        %v690 = vmax.f32 %v565, %v567
        %691 = vmax.xlane.f32.xlu0 %v690
        %v692 = vpop.xlane.xlu0 %691
        %v693 = vmax.f32 %v571, %v573
        %694 = vmax.xlane.f32.xlu0 %v693
        %v695 = vpop.xlane.xlu0 %694
        %v696 = vmax.f32 %v575, %v577
        %697 = vmax.xlane.f32.xlu0 %v696
        %v698 = vpop.xlane.xlu0 %697
        %v699 = vmax.f32 %v581, %v583
        %700 = vmax.xlane.f32.xlu0 %v699
        %v701 = vpop.xlane.xlu0 %700
        %v702 = vmax.f32 %v585, %v587
        %703 = vmax.xlane.f32.xlu0 %v702
        %v704 = vpop.xlane.xlu0 %703
        %v705 = vmax.f32 %v591, %v593
        %706 = vmax.xlane.f32.xlu0 %v705
        %v707 = vpop.xlane.xlu0 %706
        %v708 = vmax.f32 %v595, %v597
        %709 = vmax.xlane.f32.xlu0 %v708
        %v710 = vpop.xlane.xlu0 %709
        %v711 = vmax.f32 %v601, %v603
        %712 = vmax.xlane.f32.xlu0 %v711
        %v713 = vpop.xlane.xlu0 %712
        %v714 = vmax.f32 %v605, %v607
        %715 = vmax.xlane.f32.xlu0 %v714
        %v716 = vpop.xlane.xlu0 %715
        %v717 = vmax.f32 %v611, %v613
        %718 = vmax.xlane.f32.xlu0 %v717
        %v719 = vpop.xlane.xlu0 %718
        %v720 = vmax.f32 %v615, %v617
        %721 = vmax.xlane.f32.xlu0 %v720
        %v722 = vpop.xlane.xlu0 %721
        %v723 = vmax.f32 %v621, %v623
        %724 = vmax.xlane.f32.xlu0 %v723
        %v725 = vpop.xlane.xlu0 %724
        %v726 = vmax.f32 %v625, %v627
        %727 = vmax.xlane.f32.xlu0 %v726
        %v728 = vpop.xlane.xlu0 %727
        %v729 = vmax.f32 %v631, %v633
        %730 = vmax.xlane.f32.xlu0 %v729
        %v731 = vpop.xlane.xlu0 %730
        %v732 = vmax.f32 %v635, %v637
        %733 = vmax.xlane.f32.xlu0 %v732
        %v734 = vpop.xlane.xlu0 %733
        %v735 = vsub.f32 %v481, %v641
        %v736 = vsub.f32 %v483, %v641
        %v737 = vsub.f32 %v485, %v644
        %v738 = vsub.f32 %v487, %v644
        %v739 = vsub.f32 %v491, %v647
        %v740 = vsub.f32 %v493, %v647
        %v741 = vsub.f32 %v495, %v650
        %v742 = vsub.f32 %v497, %v650
        %v743 = vsub.f32 %v501, %v653
        %v744 = vsub.f32 %v503, %v653
        %v745 = vsub.f32 %v505, %v656
        %v746 = vsub.f32 %v507, %v656
        %v747 = vsub.f32 %v511, %v659
        %v748 = vsub.f32 %v513, %v659
        %v749 = vsub.f32 %v515, %v662
        %v750 = vsub.f32 %v517, %v662
        %v751 = vsub.f32 %v521, %v665
        %v752 = vsub.f32 %v523, %v665
        %v753 = vsub.f32 %v525, %v668
        %v754 = vsub.f32 %v527, %v668
        %v755 = vsub.f32 %v531, %v671
        %v756 = vsub.f32 %v533, %v671
        %v757 = vsub.f32 %v535, %v674
        %v758 = vsub.f32 %v537, %v674
        %v759 = vsub.f32 %v541, %v677
        %v760 = vsub.f32 %v543, %v677
        %v761 = vsub.f32 %v545, %v680
        %v762 = vsub.f32 %v547, %v680
        %v763 = vsub.f32 %v551, %v683
        %v764 = vsub.f32 %v553, %v683
        %v765 = vsub.f32 %v555, %v686
        %v766 = vsub.f32 %v557, %v686
        %v767 = vsub.f32 %v561, %v689
        %v768 = vsub.f32 %v563, %v689
        %v769 = vsub.f32 %v565, %v692
        %v770 = vsub.f32 %v567, %v692
        %v771 = vsub.f32 %v571, %v695
        %v772 = vsub.f32 %v573, %v695
        %v773 = vsub.f32 %v575, %v698
        %v774 = vsub.f32 %v577, %v698
        %v775 = vsub.f32 %v581, %v701
        %v776 = vsub.f32 %v583, %v701
        %v777 = vsub.f32 %v585, %v704
        %v778 = vsub.f32 %v587, %v704
        %v779 = vsub.f32 %v591, %v707
        %v780 = vsub.f32 %v593, %v707
        %v781 = vsub.f32 %v595, %v710
        %v782 = vsub.f32 %v597, %v710
        %v783 = vsub.f32 %v601, %v713
        %v784 = vsub.f32 %v603, %v713
        %v785 = vsub.f32 %v605, %v716
        %v786 = vsub.f32 %v607, %v716
        %v787 = vsub.f32 %v611, %v719
        %v788 = vsub.f32 %v613, %v719
        %v789 = vsub.f32 %v615, %v722
        %v790 = vsub.f32 %v617, %v722
        %v791 = vsub.f32 %v621, %v725
        %v792 = vsub.f32 %v623, %v725
        %v793 = vsub.f32 %v625, %v728
        %v794 = vsub.f32 %v627, %v728
        %v795 = vsub.f32 %v631, %v731
        %v796 = vsub.f32 %v633, %v731
        %v797 = vsub.f32 %v635, %v734
        %v798 = vsub.f32 %v637, %v734
        %v799 = vmul.f32 %v735, 1.442695
        %v800 = vpow.pop %v799
        %v801 = vmul.f32 %v736, 1.442695
        %v802 = vpow.pop %v801
        %v803 = vmul.f32 %v737, 1.442695
        %v804 = vpow.pop %v803
        %v805 = vmul.f32 %v738, 1.442695
        %v806 = vpow.pop %v805
        %v807 = vmul.f32 %v739, 1.442695
        %v808 = vpow.pop %v807
        %v809 = vmul.f32 %v740, 1.442695
        %v810 = vpow.pop %v809
        %v811 = vmul.f32 %v741, 1.442695
        %v812 = vpow.pop %v811
        %v813 = vmul.f32 %v742, 1.442695
        %v814 = vpow.pop %v813
        %v815 = vmul.f32 %v743, 1.442695
        %v816 = vpow.pop %v815
        %v817 = vmul.f32 %v744, 1.442695
        %v818 = vpow.pop %v817
        %v819 = vmul.f32 %v745, 1.442695
        %v820 = vpow.pop %v819
        %v821 = vmul.f32 %v746, 1.442695
        %v822 = vpow.pop %v821
        %v823 = vmul.f32 %v747, 1.442695
        %v824 = vpow.pop %v823
        %v825 = vmul.f32 %v748, 1.442695
        %v826 = vpow.pop %v825
        %v827 = vmul.f32 %v749, 1.442695
        %v828 = vpow.pop %v827
        %v829 = vmul.f32 %v750, 1.442695
        %v830 = vpow.pop %v829
        %v831 = vmul.f32 %v751, 1.442695
        %v832 = vpow.pop %v831
        %v833 = vmul.f32 %v752, 1.442695
        %v834 = vpow.pop %v833
        %v835 = vmul.f32 %v753, 1.442695
        %v836 = vpow.pop %v835
        %v837 = vmul.f32 %v754, 1.442695
        %v838 = vpow.pop %v837
        %v839 = vmul.f32 %v755, 1.442695
        %v840 = vpow.pop %v839
        %v841 = vmul.f32 %v756, 1.442695
        %v842 = vpow.pop %v841
        %v843 = vmul.f32 %v757, 1.442695
        %v844 = vpow.pop %v843
        %v845 = vmul.f32 %v758, 1.442695
        %v846 = vpow.pop %v845
        %v847 = vmul.f32 %v759, 1.442695
        %v848 = vpow.pop %v847
        %v849 = vmul.f32 %v760, 1.442695
        %v850 = vpow.pop %v849
        %v851 = vmul.f32 %v761, 1.442695
        %v852 = vpow.pop %v851
        %v853 = vmul.f32 %v762, 1.442695
        %v854 = vpow.pop %v853
        %v855 = vmul.f32 %v763, 1.442695
        %v856 = vpow.pop %v855
        %v857 = vmul.f32 %v764, 1.442695
        %v858 = vpow.pop %v857
        %v859 = vmul.f32 %v765, 1.442695
        %v860 = vpow.pop %v859
        %v861 = vmul.f32 %v766, 1.442695
        %v862 = vpow.pop %v861
        %v863 = vmul.f32 %v767, 1.442695
        %v864 = vpow.pop %v863
        %v865 = vmul.f32 %v768, 1.442695
        %v866 = vpow.pop %v865
        %v867 = vmul.f32 %v769, 1.442695
        %v868 = vpow.pop %v867
        %v869 = vmul.f32 %v770, 1.442695
        %v870 = vpow.pop %v869
        %v871 = vmul.f32 %v771, 1.442695
        %v872 = vpow.pop %v871
        %v873 = vmul.f32 %v772, 1.442695
        %v874 = vpow.pop %v873
        %v875 = vmul.f32 %v773, 1.442695
        %v876 = vpow.pop %v875
        %v877 = vmul.f32 %v774, 1.442695
        %v878 = vpow.pop %v877
        %v879 = vmul.f32 %v775, 1.442695
        %v880 = vpow.pop %v879
        %v881 = vmul.f32 %v776, 1.442695
        %v882 = vpow.pop %v881
        %v883 = vmul.f32 %v777, 1.442695
        %v884 = vpow.pop %v883
        %v885 = vmul.f32 %v778, 1.442695
        %v886 = vpow.pop %v885
        %v887 = vmul.f32 %v779, 1.442695
        %v888 = vpow.pop %v887
        %v889 = vmul.f32 %v780, 1.442695
        %v890 = vpow.pop %v889
        %v891 = vmul.f32 %v781, 1.442695
        %v892 = vpow.pop %v891
        %v893 = vmul.f32 %v782, 1.442695
        %v894 = vpow.pop %v893
        %v895 = vmul.f32 %v783, 1.442695
        %v896 = vpow.pop %v895
        %v897 = vmul.f32 %v784, 1.442695
        %v898 = vpow.pop %v897
        %v899 = vmul.f32 %v785, 1.442695
        %v900 = vpow.pop %v899
        %v901 = vmul.f32 %v786, 1.442695
        %v902 = vpow.pop %v901
        %v903 = vmul.f32 %v787, 1.442695
        %v904 = vpow.pop %v903
        %v905 = vmul.f32 %v788, 1.442695
        %v906 = vpow.pop %v905
        %v907 = vmul.f32 %v789, 1.442695
        %v908 = vpow.pop %v907
        %v909 = vmul.f32 %v790, 1.442695
        %v910 = vpow.pop %v909
        %v911 = vmul.f32 %v791, 1.442695
        %v912 = vpow.pop %v911
        %v913 = vmul.f32 %v792, 1.442695
        %v914 = vpow.pop %v913
        %v915 = vmul.f32 %v793, 1.442695
        %v916 = vpow.pop %v915
        %v917 = vmul.f32 %v794, 1.442695
        %v918 = vpow.pop %v917
        %v919 = vmul.f32 %v795, 1.442695
        %v920 = vpow.pop %v919
        %v921 = vmul.f32 %v796, 1.442695
        %v922 = vpow.pop %v921
        %v923 = vmul.f32 %v797, 1.442695
        %v924 = vpow.pop %v923
        %v925 = vmul.f32 %v798, 1.442695
        %v926 = vpow.pop %v925
        %v927 = vadd.f32 %v800, %v802
        %928 = vadd.xlane.f32.xlu0 %v927
        %v929 = vpop.xlane.xlu0 %928
        %v930 = vadd.f32 %v804, %v806
        %931 = vadd.xlane.f32.xlu0 %v930
        %v932 = vpop.xlane.xlu0 %931
        %v933 = vadd.f32 %v808, %v810
        %934 = vadd.xlane.f32.xlu0 %v933
        %v935 = vpop.xlane.xlu0 %934
        %v936 = vadd.f32 %v812, %v814
        %937 = vadd.xlane.f32.xlu0 %v936
        %v938 = vpop.xlane.xlu0 %937
        %v939 = vadd.f32 %v816, %v818
        %940 = vadd.xlane.f32.xlu0 %v939
        %v941 = vpop.xlane.xlu0 %940
        %v942 = vadd.f32 %v820, %v822
        %943 = vadd.xlane.f32.xlu0 %v942
        %v944 = vpop.xlane.xlu0 %943
        %v945 = vadd.f32 %v824, %v826
        %946 = vadd.xlane.f32.xlu0 %v945
        %v947 = vpop.xlane.xlu0 %946
        %v948 = vadd.f32 %v828, %v830
        %949 = vadd.xlane.f32.xlu0 %v948
        %v950 = vpop.xlane.xlu0 %949
        %v951 = vadd.f32 %v832, %v834
        %952 = vadd.xlane.f32.xlu0 %v951
        %v953 = vpop.xlane.xlu0 %952
        %v954 = vadd.f32 %v836, %v838
        %955 = vadd.xlane.f32.xlu0 %v954
        %v956 = vpop.xlane.xlu0 %955
        %v957 = vadd.f32 %v840, %v842
        %958 = vadd.xlane.f32.xlu0 %v957
        %v959 = vpop.xlane.xlu0 %958
        %v960 = vadd.f32 %v844, %v846
        %961 = vadd.xlane.f32.xlu0 %v960
        %v962 = vpop.xlane.xlu0 %961
        %v963 = vadd.f32 %v848, %v850
        %964 = vadd.xlane.f32.xlu0 %v963
        %v965 = vpop.xlane.xlu0 %964
        %v966 = vadd.f32 %v852, %v854
        %967 = vadd.xlane.f32.xlu0 %v966
        %v968 = vpop.xlane.xlu0 %967
        %v969 = vadd.f32 %v856, %v858
        %970 = vadd.xlane.f32.xlu0 %v969
        %v971 = vpop.xlane.xlu0 %970
        %v972 = vadd.f32 %v860, %v862
        %973 = vadd.xlane.f32.xlu0 %v972
        %v974 = vpop.xlane.xlu0 %973
        %v975 = vadd.f32 %v864, %v866
        %976 = vadd.xlane.f32.xlu0 %v975
        %v977 = vpop.xlane.xlu0 %976
        %v978 = vadd.f32 %v868, %v870
        %979 = vadd.xlane.f32.xlu0 %v978
        %v980 = vpop.xlane.xlu0 %979
        %v981 = vadd.f32 %v872, %v874
        %982 = vadd.xlane.f32.xlu0 %v981
        %v983 = vpop.xlane.xlu0 %982
        %v984 = vadd.f32 %v876, %v878
        %985 = vadd.xlane.f32.xlu0 %v984
        %v986 = vpop.xlane.xlu0 %985
        %v987 = vadd.f32 %v880, %v882
        %988 = vadd.xlane.f32.xlu0 %v987
        %v989 = vpop.xlane.xlu0 %988
        %v990 = vadd.f32 %v884, %v886
        %991 = vadd.xlane.f32.xlu0 %v990
        %v992 = vpop.xlane.xlu0 %991
        %v993 = vadd.f32 %v888, %v890
        %994 = vadd.xlane.f32.xlu0 %v993
        %v995 = vpop.xlane.xlu0 %994
        %v996 = vadd.f32 %v892, %v894
        %997 = vadd.xlane.f32.xlu0 %v996
        %v998 = vpop.xlane.xlu0 %997
        %v999 = vadd.f32 %v896, %v898
        %1000 = vadd.xlane.f32.xlu0 %v999
        %v1001 = vpop.xlane.xlu0 %1000
        %v1002 = vadd.f32 %v900, %v902
        %1003 = vadd.xlane.f32.xlu0 %v1002
        %v1004 = vpop.xlane.xlu0 %1003
        %v1005 = vadd.f32 %v904, %v906
        %1006 = vadd.xlane.f32.xlu0 %v1005
        %v1007 = vpop.xlane.xlu0 %1006
        %v1008 = vadd.f32 %v908, %v910
        %1009 = vadd.xlane.f32.xlu0 %v1008
        %v1010 = vpop.xlane.xlu0 %1009
        %v1011 = vadd.f32 %v912, %v914
        %1012 = vadd.xlane.f32.xlu0 %v1011
        %v1013 = vpop.xlane.xlu0 %1012
        %v1014 = vadd.f32 %v916, %v918
        %1015 = vadd.xlane.f32.xlu0 %v1014
        %v1016 = vpop.xlane.xlu0 %1015
        %v1017 = vadd.f32 %v920, %v922
        %1018 = vadd.xlane.f32.xlu0 %v1017
        %v1019 = vpop.xlane.xlu0 %1018
        %v1020 = vadd.f32 %v924, %v926
        %1021 = vadd.xlane.f32.xlu0 %v1020
        %v1022 = vpop.xlane.xlu0 %1021
        %v1023 = vrcp.pop %v929
        %v1024 = vrcp.pop %v932
        %v1025 = vrcp.pop %v935
        %v1026 = vrcp.pop %v938
        %v1027 = vrcp.pop %v941
        %v1028 = vrcp.pop %v944
        %v1029 = vrcp.pop %v947
        %v1030 = vrcp.pop %v950
        %v1031 = vrcp.pop %v953
        %v1032 = vrcp.pop %v956
        %v1033 = vrcp.pop %v959
        %v1034 = vrcp.pop %v962
        %v1035 = vrcp.pop %v965
        %v1036 = vrcp.pop %v968
        %v1037 = vrcp.pop %v971
        %v1038 = vrcp.pop %v974
        %v1039 = vrcp.pop %v977
        %v1040 = vrcp.pop %v980
        %v1041 = vrcp.pop %v983
        %v1042 = vrcp.pop %v986
        %v1043 = vrcp.pop %v989
        %v1044 = vrcp.pop %v992
        %v1045 = vrcp.pop %v995
        %v1046 = vrcp.pop %v998
        %v1047 = vrcp.pop %v1001
        %v1048 = vrcp.pop %v1004
        %v1049 = vrcp.pop %v1007
        %v1050 = vrcp.pop %v1010
        %v1051 = vrcp.pop %v1013
        %v1052 = vrcp.pop %v1016
        %v1053 = vrcp.pop %v1019
        %v1054 = vrcp.pop %v1022
        %v1055 = vmul.f32 %v800, %v1023
        %v1056 = vmul.f32 %v802, %v1023
        %v1057 = vmul.f32 %v804, %v1024
        %v1058 = vmul.f32 %v806, %v1024
        %v1059 = vmul.f32 %v808, %v1025
        %v1060 = vmul.f32 %v810, %v1025
        %v1061 = vmul.f32 %v812, %v1026
        %v1062 = vmul.f32 %v814, %v1026
        %v1063 = vmul.f32 %v816, %v1027
        %v1064 = vmul.f32 %v818, %v1027
        %v1065 = vmul.f32 %v820, %v1028
        %v1066 = vmul.f32 %v822, %v1028
        %v1067 = vmul.f32 %v824, %v1029
        %v1068 = vmul.f32 %v826, %v1029
        %v1069 = vmul.f32 %v828, %v1030
        %v1070 = vmul.f32 %v830, %v1030
        %v1071 = vmul.f32 %v832, %v1031
        %v1072 = vmul.f32 %v834, %v1031
        %v1073 = vmul.f32 %v836, %v1032
        %v1074 = vmul.f32 %v838, %v1032
        %v1075 = vmul.f32 %v840, %v1033
        %v1076 = vmul.f32 %v842, %v1033
        %v1077 = vmul.f32 %v844, %v1034
        %v1078 = vmul.f32 %v846, %v1034
        %v1079 = vmul.f32 %v848, %v1035
        %v1080 = vmul.f32 %v850, %v1035
        %v1081 = vmul.f32 %v852, %v1036
        %v1082 = vmul.f32 %v854, %v1036
        %v1083 = vmul.f32 %v856, %v1037
        %v1084 = vmul.f32 %v858, %v1037
        %v1085 = vmul.f32 %v860, %v1038
        %v1086 = vmul.f32 %v862, %v1038
        %v1087 = vmul.f32 %v864, %v1039
        %v1088 = vmul.f32 %v866, %v1039
        %v1089 = vmul.f32 %v868, %v1040
        %v1090 = vmul.f32 %v870, %v1040
        %v1091 = vmul.f32 %v872, %v1041
        %v1092 = vmul.f32 %v874, %v1041
        %v1093 = vmul.f32 %v876, %v1042
        %v1094 = vmul.f32 %v878, %v1042
        %v1095 = vmul.f32 %v880, %v1043
        %v1096 = vmul.f32 %v882, %v1043
        %v1097 = vmul.f32 %v884, %v1044
        %v1098 = vmul.f32 %v886, %v1044
        %v1099 = vmul.f32 %v888, %v1045
        %v1100 = vmul.f32 %v890, %v1045
        %v1101 = vmul.f32 %v892, %v1046
        %v1102 = vmul.f32 %v894, %v1046
        %v1103 = vmul.f32 %v896, %v1047
        %v1104 = vmul.f32 %v898, %v1047
        %v1105 = vmul.f32 %v900, %v1048
        %v1106 = vmul.f32 %v902, %v1048
        %v1107 = vmul.f32 %v904, %v1049
        %v1108 = vmul.f32 %v906, %v1049
        %v1109 = vmul.f32 %v908, %v1050
        %v1110 = vmul.f32 %v910, %v1050
        %v1111 = vmul.f32 %v912, %v1051
        %v1112 = vmul.f32 %v914, %v1051
        %v1113 = vmul.f32 %v916, %v1052
        %v1114 = vmul.f32 %v918, %v1052
        %v1115 = vmul.f32 %v920, %v1053
        %v1116 = vmul.f32 %v922, %v1053
        %v1117 = vmul.f32 %v924, %v1054
        %v1118 = vmul.f32 %v926, %v1054
        %v1119 = vpack.c.bf16 %v1057, %v1055
        %v1120 = vpack.c.bf16 %v1058, %v1056
        %v1121 = vpack.c.bf16 %v1061, %v1059
        %v1122 = vpack.c.bf16 %v1062, %v1060
        %v1123 = vpack.c.bf16 %v1065, %v1063
        %v1124 = vpack.c.bf16 %v1066, %v1064
        %v1125 = vpack.c.bf16 %v1069, %v1067
        %v1126 = vpack.c.bf16 %v1070, %v1068
        %v1127 = vpack.c.bf16 %v1073, %v1071
        %v1128 = vpack.c.bf16 %v1074, %v1072
        %v1129 = vpack.c.bf16 %v1077, %v1075
        %v1130 = vpack.c.bf16 %v1078, %v1076
        %v1131 = vpack.c.bf16 %v1081, %v1079
        %v1132 = vpack.c.bf16 %v1082, %v1080
        %v1133 = vpack.c.bf16 %v1085, %v1083
        %v1134 = vpack.c.bf16 %v1086, %v1084
        %v1135 = vpack.c.bf16 %v1089, %v1087
        %v1136 = vpack.c.bf16 %v1090, %v1088
        %v1137 = vpack.c.bf16 %v1093, %v1091
        %v1138 = vpack.c.bf16 %v1094, %v1092
        %v1139 = vpack.c.bf16 %v1097, %v1095
        %v1140 = vpack.c.bf16 %v1098, %v1096
        %v1141 = vpack.c.bf16 %v1101, %v1099
        %v1142 = vpack.c.bf16 %v1102, %v1100
        %v1143 = vpack.c.bf16 %v1105, %v1103
        %v1144 = vpack.c.bf16 %v1106, %v1104
        %v1145 = vpack.c.bf16 %v1109, %v1107
        %v1146 = vpack.c.bf16 %v1110, %v1108
        %v1147 = vpack.c.bf16 %v1113, %v1111
        %v1148 = vpack.c.bf16 %v1114, %v1112
        %v1149 = vpack.c.bf16 %v1117, %v1115
        %v1150 = vpack.c.bf16 %v1118, %v1116
        %1152 = vset.pattern.permute.xlu0 0
        %1153 = vperm.xlu0 %1152, %v256
        %v1154 = vpop.permute.xlu0 %1153
        %1157 = vset.pattern.permute.xlu0 0
        %1158 = vperm.xlu0 %1157, %v257
        %v1159 = vpop.permute.xlu0 %1158
        %1162 = vset.pattern.permute.xlu0 0
        %1163 = vperm.xlu0 %1162, %v258
        %v1164 = vpop.permute.xlu0 %1163
        %1167 = vset.pattern.permute.xlu0 0
        %1168 = vperm.xlu0 %1167, %v259
        %v1169 = vpop.permute.xlu0 %1168
        %v1175 = vunpack.c.l.b16 %v248
        %v1176 = vunpack.c.l.b16 %v249
        %v1177 = vunpack.c.l.b16 %v250
        %v1178 = vunpack.c.l.b16 %v251
        %v1179 = vpack.c.b16 %v1176, %v1175
        %v1180 = vpack.c.b16 %v1178, %v1177
        %v1182 = vsel %vm302, %v1179, 0
        %v1185 = vsel %vm302, %v1180, 0
        %1187 = vmatprep.subr.bf16.mxu0 %v269
        %1188 = vmatpush1.bf16.msra.mxu0 %v268
        %1189 = vmatprep.subr.bf16.mxu0 %v271
        %1190 = vmatpush1.bf16.msra.mxu0 %v270
        %1191 = vmatprep.subr.bf16.mxu0 0
        %1192 = vmatpush1.bf16.msra.mxu0 0
        %1193 = vmatprep.subr.bf16.mxu0 0
        %1194 = vmatpush1.bf16.msra.mxu0 0
        %1195 = vmatprep.subr.bf16.mxu0 0
        %1196 = vmatpush1.bf16.msra.mxu0 0
        %1197 = vmatprep.subr.bf16.mxu0 0
        %1198 = vmatpush1.bf16.msra.mxu0 0
        %1199 = vmatprep.subr.bf16.mxu0 0
        %1200 = vmatpush1.bf16.msra.mxu0 0
        %1201 = vmatprep.subr.bf16.mxu0 0
        %1202 = vmatpush1.bf16.msra.mxu0 0
        %1203 = vmatprep.subr.bf16.mxu0 0
        %1204 = vmatpush1.bf16.msra.mxu0 0
        %1205 = vmatprep.subr.bf16.mxu0 0
        %1206 = vmatpush1.bf16.msra.mxu0 0
        %1207 = vmatprep.subr.bf16.mxu0 0
        %1208 = vmatpush1.bf16.msra.mxu0 0
        %1209 = vmatprep.subr.bf16.mxu0 0
        %1210 = vmatpush1.bf16.msra.mxu0 0
        %1211 = vmatprep.subr.bf16.mxu0 0
        %1212 = vmatpush1.bf16.msra.mxu0 0
        %1213 = vmatprep.subr.bf16.mxu0 0
        %1214 = vmatpush1.bf16.msra.mxu0 0
        %1215 = vmatprep.subr.bf16.mxu0 0
        %1216 = vmatpush1.bf16.msra.mxu0 0
        %1217 = vmatprep.subr.bf16.mxu0 0
        %1218 = vmatpush1.bf16.msra.mxu0 0
        %1219 = vmatprep.mubr.bf16.mxu0 0
        %1220 = vmatmul.mubr.bf16.gmra.mrb[0].mxu0 %v1182
        %v1221 = vpop.f32.mrb[0].mxu0
        %v1222 = vadd.f32 %v1154, %v1221
        %v1223 = vpop.f32.mrb[0].mxu0
        %v1224 = vadd.f32 %v1154, %v1223
        %v1225 = vpop.f32.mrb[0].mxu0
        %v1226 = vadd.f32 %v1159, %v1225
        %v1227 = vpop.f32.mrb[0].mxu0
        %v1228 = vadd.f32 %v1159, %v1227
        %1229 = vmatprep.mubr.bf16.mxu0 0
        %1230 = vmatmul.mubr.bf16.gmra.mrb[0].mxu0 %v1185
        %v1231 = vpop.f32.mrb[0].mxu0
        %v1232 = vadd.f32 %v1164, %v1231
        %v1233 = vpop.f32.mrb[0].mxu0
        %v1234 = vadd.f32 %v1164, %v1233
        %v1235 = vpop.f32.mrb[0].mxu0
        %v1236 = vadd.f32 %v1169, %v1235
        %v1237 = vpop.f32.mrb[0].mxu0
        %v1238 = vadd.f32 %v1169, %v1237
        %1239 = vdwg.mxu0
        %v1240 = vpack.c.bf16 %v1226, %v1222
        %v1241 = vpack.c.bf16 %v1228, %v1224
        %v1242 = vpack.c.bf16 %v1236, %v1232
        %v1243 = vpack.c.bf16 %v1238, %v1234
        %1244 = vmatprep.subr.bf16.mxu0 %v1120
        %1245 = vmatpush1.bf16.xpose.msra.mxu0 %v1119
        %1246 = vmatprep.subr.bf16.mxu0 %v1122
        %1247 = vmatpush1.bf16.xpose.msra.mxu0 %v1121
        %1248 = vmatprep.subr.bf16.mxu0 %v1124
        %1249 = vmatpush1.bf16.xpose.msra.mxu0 %v1123
        %1250 = vmatprep.subr.bf16.mxu0 %v1126
        %1251 = vmatpush1.bf16.xpose.msra.mxu0 %v1125
        %1252 = vmatprep.subr.bf16.mxu0 %v1128
        %1253 = vmatpush1.bf16.xpose.msra.mxu0 %v1127
        %1254 = vmatprep.subr.bf16.mxu0 %v1130
        %1255 = vmatpush1.bf16.xpose.msra.mxu0 %v1129
        %1256 = vmatprep.subr.bf16.mxu0 %v1132
        %1257 = vmatpush1.bf16.xpose.msra.mxu0 %v1131
        %1258 = vmatprep.subr.bf16.mxu0 %v1134
        %1259 = vmatpush1.bf16.xpose.msra.mxu0 %v1133
        %1260 = vmatprep.subr.bf16.mxu0 %v1136
        %1261 = vmatpush1.bf16.xpose.msra.mxu0 %v1135
        %1262 = vmatprep.subr.bf16.mxu0 %v1138
        %1263 = vmatpush1.bf16.xpose.msra.mxu0 %v1137
        %1264 = vmatprep.subr.bf16.mxu0 %v1140
        %1265 = vmatpush1.bf16.xpose.msra.mxu0 %v1139
        %1266 = vmatprep.subr.bf16.mxu0 %v1142
        %1267 = vmatpush1.bf16.xpose.msra.mxu0 %v1141
        %1268 = vmatprep.subr.bf16.mxu0 %v1144
        %1269 = vmatpush1.bf16.xpose.msra.mxu0 %v1143
        %1270 = vmatprep.subr.bf16.mxu0 %v1146
        %1271 = vmatpush1.bf16.xpose.msra.mxu0 %v1145
        %1272 = vmatprep.subr.bf16.mxu0 %v1148
        %1273 = vmatpush1.bf16.xpose.msra.mxu0 %v1147
        %1274 = vmatprep.subr.bf16.mxu0 %v1150
        %1275 = vmatpush1.bf16.xpose.msra.mxu0 %v1149
        %1276 = vmatprep.mubr.bf16.mxu0 %v1241
        %1277 = vmatmul.mubr.bf16.gmra.mrb[0].mxu0 %v1240
        %v1278 = vpop.f32.mrb[0].mxu0
        %v1279 = vadd.f32 %v260, %v1278
        %v1280 = vpop.f32.mrb[0].mxu0
        %v1281 = vadd.f32 %v261, %v1280
        %v1282 = vpop.f32.mrb[0].mxu0
        %v1283 = vadd.f32 %v262, %v1282
        %v1284 = vpop.f32.mrb[0].mxu0
        %v1285 = vadd.f32 %v263, %v1284
        %1286 = vmatprep.mubr.bf16.mxu0 %v1243
        %1287 = vmatmul.mubr.bf16.gmra.mrb[0].mxu0 %v1242
        %v1288 = vpop.f32.mrb[0].mxu0
        %v1289 = vadd.f32 %v264, %v1288
        %v1290 = vpop.f32.mrb[0].mxu0
        %v1291 = vadd.f32 %v265, %v1290
        %v1292 = vpop.f32.mrb[0].mxu0
        %v1293 = vadd.f32 %v266, %v1292
        %v1294 = vpop.f32.mrb[0].mxu0
        %v1295 = vadd.f32 %v267, %v1294
        %1296 = vdwg.mxu0
        %1297 = vst [vmem:[%s242] sm:$0xff] %v1279
        %1298 = vst [vmem:[%s242 + $0x8] sm:$0xff] %v1281
        %1299 = vst [vmem:[%s242 + $0x10] sm:$0xff] %v1283
        %1300 = vst [vmem:[%s242 + $0x18] sm:$0xff] %v1285
        %1301 = vst [vmem:[%s242 + $0x20] sm:$0xff] %v1289
        %1302 = vst [vmem:[%s242 + $0x28] sm:$0xff] %v1291
        %1303 = vst [vmem:[%s242 + $0x30] sm:$0xff] %v1293
        %1304 = vst [vmem:[%s242 + $0x38] sm:$0xff] %v1295
        %s1305 = sand.u32 %s140, 1
        %s1306 = scalar_lea.sflag [#allocation4], %s1305
        %s1307 = sand.u32 %s140, 1
        %s1308 = smul.addr %s1307, 64
        %s1309 = scalar_lea.vmem [#allocation5], %s1308
        // Predicated region
        $region45: #{tpu_custom_call.1} parent=39 // pred_check
          %p1310 = pneg %p150
        $region46: #{tpu_custom_call.1} parent=39 // pred_check_branch
          %1312 = sbr.rel (%p1310) target = $region48
        $region47: #{tpu_custom_call.1} parent=39 // pred_region
          %s1314 = ssub.s32 1024, 1024
          %1315 = vsyncadd %s1306, %s1314
          %s1316 = smul.addr %s22, 8
          %s1317 = smul.addr %s1316, 128
          %s1318 = scalar_lea.hbm %s5, %s1317
          %s1319 = sshll.u32 %s1309, 4
          %s1320 = int_to_ptr.vmem [resolvable:$true] %s1319
          %1325 = dma.vmem_to_hbm [thread:$0]  %s1320, 1024, %s1318, %s1306, 256, 256, 16
        $region48: #{tpu_custom_call.1} parent=39 // pred_fallthru
          _
      $region40: #{tpu_custom_call.1} parent=5 // pred_fallthru
        _
      %p1326 = scmp.le.s32.totalorder 2, %s17
      // Predicated region
      $region49: #{tpu_custom_call.1} parent=5 // pred_check
        %p1327 = pneg %p1326
      $region50: #{tpu_custom_call.1} parent=5 // pred_check_branch
        %1329 = sbr.rel (%p1327) target = $region52
      $region51: #{tpu_custom_call.1} parent=5 // pred_region
        %s1330 = ssub.s32 %s17, 2
        // Predicated region
        $region53: #{tpu_custom_call.1} parent=51 // pred_check
          %p1331 = pneg %p156
        $region54: #{tpu_custom_call.1} parent=51 // pred_check_branch
          %1333 = sbr.rel (%p1331) target = $region56
        $region55: #{tpu_custom_call.1} parent=51 // pred_region
          %s1334 = sand.u32 %s141, 1
          %s1335 = scalar_lea.sflag [#allocation4], %s1334
          %s1336 = sand.u32 %s141, 1
          %s1337 = smul.addr %s1336, 64
          %s1338 = scalar_lea.vmem [#allocation5], %s1337
          %1339 = dma.done %s1335, 1024
        $region56: #{tpu_custom_call.1} parent=51 // pred_fallthru
          _
      $region52: #{tpu_custom_call.1} parent=5 // pred_fallthru
        _
    $region6: #{tpu_custom_call.1} parent=1 // loop_footer
      %s21 = sadd.s32 1, %s17
    $region7: #{tpu_custom_call.1} parent=1 // loop_footer_branch
      %16 = sbr.rel target = $region3
    $region8: #{tpu_custom_call.1} parent=1 // loop_exit
      _
    %1340 = vsyncpa [#allocation3], 1
    %s1341 = scalar_lea.sflag [#allocation3], 1
    %1342 = vsyncpa %s1341, 1
    %1343 = vsyncpa [#allocation4], 1
    %s1344 = scalar_lea.sflag [#allocation4], 1
    %1345 = vsyncpa %s1344, 1

</llo_original>
